<compile_context>
chip_gen: v7x
topology: tpu7x:2x2x1
jax: 0.10.0
libtpu: 0.0.40
codegen_flags: <defaults>
</compile_context>

<pallas_src>
import jax
import jax.numpy as jnp
from jax.experimental import pallas as pl
from jax.experimental.pallas import tpu as pltpu

_LANE = 128
# ~2 MiB per block: in+out, double-buffered (4x block) stays well under the
# v7x 32 MiB scoped-VMEM default; also optimal streaming size on v5e/v6e.
_TARGET_BLOCK_BYTES = 2 * 1024 * 1024


# ---------------- Pallas kernel (backward hot path) ----------------

def _neg_scale_kernel(neg_alpha_ref, g_ref, o_ref):
    # grad_in = -alpha * grad_out   (scale held in SMEM, f32; cast at the end)
    g = g_ref[...]
    o_ref[...] = (neg_alpha_ref[0] * g.astype(jnp.float32)).astype(o_ref.dtype)


# ---------------- layout helpers ----------------

def _choose_layout(n, itemsize):
    """Pick (width, rows, block_rows) for a lane-dense (rows, width) slab."""
    # Widest lane width (multiple of 128) that evenly divides the element count.
    width = _LANE
    for w in (4096, 2048, 1024, 512, 256):
        if n % w == 0:
            width = w
            break
    rows = n // width
    # Rows per block targeting ~2 MiB, rounded to a multiple of 32 so the
    # sublane tiling stays aligned for f32 / bf16 / 8-bit dtypes.
    block_rows = max(32, (_TARGET_BLOCK_BYTES // (width * itemsize)) // 32 * 32)
    if rows <= block_rows:
        block_rows = rows  # single full-extent block (always legal)
    return width, rows, block_rows


def _neg_scale_pallas(g, alpha):
    orig_shape = g.shape
    orig_dtype = g.dtype
    itemsize = jnp.dtype(orig_dtype).itemsize

    flat = g.reshape(-1)
    n = flat.shape[0]
    pad = (-n) % _LANE
    if pad:  # only for ragged element counts; no copy in the common case
        flat = jnp.pad(flat, (0, pad))
    n_p = n + pad

    width, rows, block_rows = _choose_layout(n_p, itemsize)
    slab = flat.reshape(rows, width)

    neg_alpha = jnp.asarray(-alpha, dtype=jnp.float32).reshape(1)

    out = pl.pallas_call(
        _neg_scale_kernel,
        out_shape=jax.ShapeDtypeStruct((rows, width), orig_dtype),
        grid=(pl.cdiv(rows, block_rows),),
        in_specs=[
            pl.BlockSpec(memory_space=pltpu.SMEM),             # -alpha scalar
            pl.BlockSpec((block_rows, width), lambda i: (i, 0)),  # grad slab
        ],
        out_specs=pl.BlockSpec((block_rows, width), lambda i: (i, 0)),
        compiler_params=pltpu.CompilerParams(
            dimension_semantics=("parallel",)),
        cost_estimate=pl.CostEstimate(
            flops=n_p, transcendentals=0, bytes_accessed=2 * n_p * itemsize),
    )(neg_alpha, slab)

    out_flat = out.reshape(-1)
    if pad:
        out_flat = out_flat[:n]
    return out_flat.reshape(orig_shape)


# ---------------- custom_vjp matching GradientReversalFunction ----------------

@jax.custom_vjp
def gradient_reversal(x, alpha):
    # Forward is a pure identity: no kernel, no HBM traffic.
    return x


def _grev_fwd(x, alpha):
    return x, (alpha,)


def _grev_bwd(residuals, grad_output):
    (alpha,) = residuals
    grad_input = _neg_scale_pallas(grad_output, alpha)
    # alpha is non-trainable: zero cotangent (structure must match primals).
    return grad_input, jnp.zeros_like(alpha)


gradient_reversal.defvjp(_grev_fwd, _grev_bwd)


class GradientReversalModule:
    """JAX/Pallas mirror of the PyTorch GradientReversalModule."""

    def __init__(self, alpha):
        # alpha is a non-trainable scalar, like torch.tensor(alpha, requires_grad=False)
        self.alpha = jnp.asarray(alpha, dtype=jnp.float32)

    def __call__(self, x):
        return gradient_reversal(x, self.alpha)


if __name__ == "__main__":
    key = jax.random.PRNGKey(0)
    # layout: NCHW, same as PyTorch (batch=2, channels=4, spatial=16x16)
    x = jax.random.normal(key, (2, 4, 16, 16), dtype=jnp.float32)

    module = GradientReversalModule(alpha=1.5)

    # Forward: identity (kernel-free)
    y = jax.block_until_ready(module(x))
    assert y.shape == x.shape and y.dtype == x.dtype
    assert bool(jnp.allclose(y, x))

    # Backward: grad should be -alpha * upstream_grad (exercises the Pallas kernel)
    g = jax.grad(lambda inp: jnp.sum(module(inp)))(x)
    g = jax.block_until_ready(g)
    assert g.shape == x.shape and g.dtype == x.dtype
    assert bool(jnp.allclose(g, -1.5 * jnp.ones_like(x)))

    print("KERNEL_OK")
</pallas_src>

<mosaic_0001>
module attributes {stable_mosaic.version = 11 : i64} {
  func.func @_neg_scale_kernel(%arg0: i32, %arg1: memref<1xf32, #tpu.memory_space<smem>>, %arg2: memref<1x2048xf32, #tpu.memory_space<vmem>>, %arg3: memref<1x2048xf32, #tpu.memory_space<vmem>>) attributes {dimension_semantics = [#tpu.dimension_semantics<parallel>], iteration_bounds = array<i64: 1>, scalar_prefetch = 0 : i64, scratch_operands = 0 : i64, tpu.core_type = #tpu.core_type<tc>, window_params = [{transform_indices = @transform_0, window_bounds = array<i64: 1>}, {transform_indices = @transform_1, window_bounds = array<i64: 1, 2048>}, {transform_indices = @transform_2, window_bounds = array<i64: 1, 2048>}]} {
    %c0 = arith.constant 0 : index
    %c0_0 = arith.constant 0 : index
    %0 = vector.load %arg2[%c0, %c0_0] : memref<1x2048xf32, #tpu.memory_space<vmem>>, vector<1x2048xf32>
    %c0_1 = arith.constant 0 : index
    %1 = memref.load %arg1[%c0_1] : memref<1xf32, #tpu.memory_space<smem>>
    %2 = vector.broadcast %1 : f32 to vector<1x2048xf32>
    %3 = arith.mulf %2, %0 : vector<1x2048xf32>
    %c0_2 = arith.constant 0 : index
    %c0_3 = arith.constant 0 : index
    %4 = vector.load %arg3[%c0_2, %c0_3] : memref<1x2048xf32, #tpu.memory_space<vmem>>, vector<1x2048xf32>
    tpu.vector_store %arg3[%c0_2, %c0_3], %3 {strides = array<i32>} : memref<1x2048xf32, #tpu.memory_space<vmem>>, vector<1x2048xf32>,
    return
  }
  func.func @transform_0(%arg0: i32) -> i32 {
    %c0_i32 = arith.constant 0 : i32
    %c0_i32_0 = arith.constant 0 : i32
    return %c0_i32 : i32
  }
  func.func @transform_1(%arg0: i32) -> (i32, i32) {
    %c0_i32 = arith.constant 0 : i32
    %c0_i32_0 = arith.constant 0 : i32
    return %arg0, %c0_i32 : i32, i32
  }
  func.func @transform_2(%arg0: i32) -> (i32, i32) {
    %c0_i32 = arith.constant 0 : i32
    %c0_i32_0 = arith.constant 0 : i32
    return %arg0, %c0_i32 : i32, i32
  }
}

</mosaic_0001>

<llo_original>
// kernel: tpu_custom_call.1
$region0: #{tpu_custom_call.1}
  #allocation0 [shape = 'u32[]', space=smem, size = 0x4, offset = 0x4, fixed_abs, tag = 'smem constant byte address 0x4 - core index']
  #allocation1 [shape = 'u32[144,128]{1,0:T(1,128)}', space=vmem, size = 0x12000, scoped, tag = 'internal scratch']
  #allocation2 [shape = 'f32[1]{0:T(128)S(6)}', space=smem, size = 0x200, scoped, tag = 'scoped memory for tpu_custom_call.1']
  %s0 = inlined_call_operand.<no memory space> [shape: f32[1], index: 0, kind: input, shape index: {}]
  %s1 = inlined_call_operand.hbm [shape: f32[1,2048], index: 1, kind: input, shape index: {}]
  %s2 = inlined_call_operand.hbm [shape: f32[1,2048], index: 2, kind: output, shape index: {}]
  %s3 = sld [smem:[#allocation0]]
  $region22: #{tpu_custom_call.1} parent=0
    _
  %s5 = ssub.s32 1, %s3
  %s6 = scalar_select 0, %s5, %s3
  %7 = sst [smem:[#allocation2]] %s0
  $region1: #{tpu_custom_call.1} parent=0
    #allocation3 [shape = 'u8[8192]{0}', space=vmem, size = 0x2000, scoped, tag = 'input window, operand 1, single buffered']
    #allocation4 [shape = 's32[1]{0}', space=sflag, size = 0x4, scoped, tag = 'scoped memory for tpu_custom_call.1']
    #allocation5 [shape = 's32[1]{0}', space=sflag, size = 0x4, scoped, tag = 'scoped memory for tpu_custom_call.1']
    #allocation6 [shape = 'u8[8192]{0}', space=vmem, size = 0x2000, scoped, tag = 'output window, operand 0, single buffered']
    %8 = vsyncpa [#allocation4], 0
    %9 = vsyncpa [#allocation5], 0
    // Predicated region
    $region2: #{tpu_custom_call.1} parent=1 // pred_check
      _
    $region3: #{tpu_custom_call.1} parent=1 // pred_check_branch
      %11 = sbr.rel (0) target = $region5
    $region4: #{tpu_custom_call.1} parent=1 // pred_region
      _
    $region5: #{tpu_custom_call.1} parent=1 // pred_fallthru
      _
    // Predicated region
    $region6: #{tpu_custom_call.1} parent=1 // pred_check
      _
    $region7: #{tpu_custom_call.1} parent=1 // pred_check_branch
      %13 = sbr.rel (0) target = $region9
    $region8: #{tpu_custom_call.1} parent=1 // pred_region
      %s15 = ssub.s32 256, 256
      %16 = vsyncadd [#allocation4], %s15
      %s18 = sshll.u32 [#allocation3], 4
      %s19 = int_to_ptr.vmem [resolvable:$true] %s18
      %21 = dma.hbm_to_vmem [thread:$0]  %s1, 256, %s19, [#allocation4]
    $region9: #{tpu_custom_call.1} parent=1 // pred_fallthru
      _
    // Predicated region
    $region10: #{tpu_custom_call.1} parent=1 // pred_check
      _
    $region11: #{tpu_custom_call.1} parent=1 // pred_check_branch
      %23 = sbr.rel (0) target = $region13
    $region12: #{tpu_custom_call.1} parent=1 // pred_region
      %24 = dma.done [#allocation4], 256
    $region13: #{tpu_custom_call.1} parent=1 // pred_fallthru
      _
    %v25 = vld [vmem:[#allocation3] sm:$0xff]
    %v26 = vld [vmem:[#allocation3 + $0x8] sm:$0xff]
    %s27 = sld [smem:[#allocation2]]
    %v28 = vstv %s27
    %v29 = vmul.f32 %v28, %v25
    %v30 = vmul.f32 %v28, %v26
    %31 = vst [vmem:[#allocation6] sm:$0xff] %v29
    %32 = vst [vmem:[#allocation6 + $0x8] sm:$0xff] %v30
    // Predicated region
    $region14: #{tpu_custom_call.1} parent=1 // pred_check
      _
    $region15: #{tpu_custom_call.1} parent=1 // pred_check_branch
      %34 = sbr.rel (0) target = $region17
    $region16: #{tpu_custom_call.1} parent=1 // pred_region
      %s36 = ssub.s32 256, 256
      %37 = vsyncadd [#allocation5], %s36
      %s39 = sshll.u32 [#allocation6], 4
      %s40 = int_to_ptr.vmem [resolvable:$true] %s39
      %42 = dma.vmem_to_hbm [thread:$0]  %s40, 256, %s2, [#allocation5]
    $region17: #{tpu_custom_call.1} parent=1 // pred_fallthru
      _
    // Predicated region
    $region18: #{tpu_custom_call.1} parent=1 // pred_check
      _
    $region19: #{tpu_custom_call.1} parent=1 // pred_check_branch
      %44 = sbr.rel (0) target = $region21
    $region20: #{tpu_custom_call.1} parent=1 // pred_region
      %45 = dma.done [#allocation5], 256
    $region21: #{tpu_custom_call.1} parent=1 // pred_fallthru
      _
    %46 = vsyncpa [#allocation4], 1
    %47 = vsyncpa [#allocation5], 1

</llo_original>
